<compile_context>
chip_gen: v7x
topology: tpu7x:2x2x1
jax: 0.10.0
libtpu: 0.0.40
codegen_flags: <defaults>
</compile_context>

<pallas_src>
import math
import functools

import jax
import jax.numpy as jnp
from jax import lax
from jax.experimental import pallas as pl
from jax.experimental.pallas import tpu as pltpu


def _gelu_exact(x):
    # PyTorch nn.GELU() default: exact erf-based GELU.
    return 0.5 * x * (1.0 + lax.erf(x * (1.0 / math.sqrt(2.0))))


def timenet_kernel(t_ref, w1_ref, b1_ref, w2_ref, b2_ref, o_ref):
    # t_ref: (TILE_B, 1); w1/b1/b2: (1, Dp) f32; w2: (Dp, Dp) f32 or bf16; o_ref: (TILE_B, Dp) f32
    t = t_ref[...]                                   # (TILE_B, 1)
    # First linear has K=1: broadcasted scale + bias on the VPU (no MXU needed).
    h = t * w1_ref[...] + b1_ref[...]                # (TILE_B, Dp) f32
    h = _gelu_exact(h)
    # Second linear: MXU matmul, f32 accumulate. Cast h to w2's dtype so the
    # optional bf16 weight path hits the native MXU datapath (no-op for f32).
    y = jnp.dot(h.astype(w2_ref.dtype), w2_ref[...],
                preferred_element_type=jnp.float32)
    o_ref[...] = (y + b2_ref[...]).astype(o_ref.dtype)


def _round_up(x, m):
    return ((x + m - 1) // m) * m


def _vmem_capacity_bytes():
    try:
        return int(pltpu.get_tpu_info().vmem_capacity_bytes)
    except Exception:
        return 64 * 1024 * 1024  # conservative (v7x per-TC) fallback


def _timenet_pallas_call(t_p, w1_p, b1_p, w2_p, b2_p, *, tile_b_eff, grid_b, D_pad):
    """Runs the kernel on already-padded operands. t_p: (grid_b*tile_b_eff, 1)."""
    B_pad = grid_b * tile_b_eff
    w_itemsize = jnp.dtype(w2_p.dtype).itemsize

    # VMEM budget: resident weights (Buffered(1) => single copy) +
    # double-buffered t/out activation tiles + in-kernel intermediates (h, y).
    weight_bytes = w_itemsize * D_pad * D_pad + 4 * 3 * D_pad
    act_bytes = 2 * 4 * tile_b_eff * (1 + D_pad)        # double-buffered t + out
    interm_bytes = 2 * 4 * tile_b_eff * D_pad           # h, y intermediates
    vmem_est = weight_bytes + act_bytes + interm_bytes
    vmem_cap = int(0.85 * _vmem_capacity_bytes())       # leave Mosaic scratch headroom
    vmem_limit = int(min(vmem_cap, max(16 * 1024 * 1024, int(1.25 * vmem_est))))

    const_map = lambda i: (0, 0)
    return pl.pallas_call(
        timenet_kernel,
        out_shape=jax.ShapeDtypeStruct((B_pad, D_pad), jnp.float32),
        grid=(grid_b,),
        in_specs=[
            pl.BlockSpec((tile_b_eff, 1), lambda i: (i, 0)),
            pl.BlockSpec((1, D_pad), const_map, pipeline_mode=pl.Buffered(1)),
            pl.BlockSpec((1, D_pad), const_map, pipeline_mode=pl.Buffered(1)),
            pl.BlockSpec((D_pad, D_pad), const_map, pipeline_mode=pl.Buffered(1)),
            pl.BlockSpec((1, D_pad), const_map, pipeline_mode=pl.Buffered(1)),
        ],
        out_specs=pl.BlockSpec((tile_b_eff, D_pad), lambda i: (i, 0)),
        compiler_params=pltpu.CompilerParams(
            dimension_semantics=("parallel",),
            vmem_limit_bytes=vmem_limit,
        ),
    )(t_p, w1_p, b1_p, w2_p, b2_p)


class TimeNetPallas:
    """Pads/casts the weights once; per-call work is only the kernel (plus, when
    strictly needed, a small t pad and the unpad slice of the output)."""

    def __init__(self, w1, b1, w2, b2, *, tile_b=512, use_bf16_matmul=False):
        assert w1.shape[0] == 1 and w2.shape[0] == w2.shape[1]
        self.D = int(w2.shape[1])
        self.D_pad = _round_up(self.D, 128)
        self.tile_b = int(tile_b)

        f32 = jnp.float32
        D, D_pad = self.D, self.D_pad
        w2_dtype = jnp.bfloat16 if use_bf16_matmul else f32

        # One-time padding/casting (zero feature-padding is exact: padded w2
        # rows/cols are zero, so padded output columns are exactly 0).
        if D_pad == D:
            self.w1_p = w1.reshape(1, D).astype(f32)
            self.b1_p = b1.reshape(1, D).astype(f32)
            self.w2_p = w2.astype(w2_dtype)
            self.b2_p = b2.reshape(1, D).astype(f32)
        else:
            self.w1_p = jnp.zeros((1, D_pad), f32).at[:, :D].set(w1.reshape(1, D).astype(f32))
            self.b1_p = jnp.zeros((1, D_pad), f32).at[:, :D].set(b1.reshape(1, D).astype(f32))
            self.w2_p = jnp.zeros((D_pad, D_pad), w2_dtype).at[:D, :D].set(w2.astype(w2_dtype))
            self.b2_p = jnp.zeros((1, D_pad), f32).at[:, :D].set(b2.reshape(1, D).astype(f32))

    def _tiling(self, B):
        # Balanced batch tile: roughly equal tiles, each a multiple of 8 sublanes,
        # capped by tile_b and by the VMEM left over after the resident weights.
        tile_b = self.tile_b
        vmem_cap = int(0.85 * _vmem_capacity_bytes())
        weight_bytes = jnp.dtype(self.w2_p.dtype).itemsize * self.D_pad * self.D_pad
        # ~4 f32 copies of a (tile_b, D_pad) activation tile live at once
        # (double-buffered out + h + y intermediates).
        per_row = 4 * 4 * self.D_pad
        max_tile_b = max(64, ((vmem_cap - weight_bytes) // per_row) // 8 * 8)
        tile_b = max(8, min(tile_b, max_tile_b))

        grid_b = pl.cdiv(B, tile_b)
        tile_b_eff = _round_up(pl.cdiv(B, grid_b), 8)
        grid_b = pl.cdiv(B, tile_b_eff)
        return tile_b_eff, grid_b

    def __call__(self, t):
        assert t.ndim == 2 and t.shape[1] == 1
        B = int(t.shape[0])
        D, D_pad = self.D, self.D_pad
        tile_b_eff, grid_b = self._tiling(B)
        B_pad = grid_b * tile_b_eff

        t_f32 = t.astype(jnp.float32)
        if B_pad == B:
            t_p = t_f32                                  # no per-call pad copy
        else:
            t_p = jnp.zeros((B_pad, 1), jnp.float32).at[:B, :].set(t_f32)

        out_pad = _timenet_pallas_call(
            t_p, self.w1_p, self.b1_p, self.w2_p, self.b2_p,
            tile_b_eff=tile_b_eff, grid_b=grid_b, D_pad=D_pad)

        if B_pad == B and D_pad == D:
            return out_pad                               # no per-call slice copy
        return out_pad[:B, :D]


def init_params(key, dim):
    # Mimics PyTorch Linear defaults: uniform +/- 1/sqrt(fan_in), W stored as (in, out).
    k1, k2, k3, k4 = jax.random.split(key, 4)
    bound1 = 1.0 / math.sqrt(1.0)
    bound2 = 1.0 / math.sqrt(dim)
    w1 = jax.random.uniform(k1, (1, dim), jnp.float32, -bound1, bound1)
    b1 = jax.random.uniform(k2, (1, dim), jnp.float32, -bound1, bound1)
    w2 = jax.random.uniform(k3, (dim, dim), jnp.float32, -bound2, bound2)
    b2 = jax.random.uniform(k4, (1, dim), jnp.float32, -bound2, bound2)
    return w1, b1, w2, b2


def _reference(t, w1, b1, w2, b2):
    h = jax.nn.gelu(t @ w1 + b1, approximate=False)
    return h @ w2 + b2


if __name__ == "__main__":
    key = jax.random.PRNGKey(0)

    # Small shapes consistent with the module (TimeNet(dim) applied to (B, 1) timesteps).
    dim = 32
    kp, kt, kt2 = jax.random.split(key, 3)
    w1, b1, w2, b2 = init_params(kp, dim)

    net = TimeNetPallas(w1, b1, w2, b2)  # weights padded/cast once, f32 matmul path

    # Check 1: tiny batch, single tile, no batch padding.
    batch = 8
    t = jax.random.uniform(kt, (batch, 1), jnp.float32)
    out = jax.block_until_ready(net(t))
    ref = _reference(t, w1, b1, w2, b2)
    assert out.shape == (batch, dim)
    assert jnp.allclose(out, ref, atol=1e-5, rtol=1e-5)

    # Check 2: exercises grid > 1, balanced batch tiling, and batch/feature padding.
    batch2 = 1100
    t2 = jax.random.uniform(kt2, (batch2, 1), jnp.float32)
    out2 = jax.block_until_ready(net(t2))
    ref2 = _reference(t2, w1, b1, w2, b2)
    assert out2.shape == (batch2, dim)
    assert jnp.allclose(out2, ref2, atol=1e-5, rtol=1e-5)

    print("KERNEL_OK")
</pallas_src>

<mosaic_0001>
module attributes {stable_mosaic.version = 11 : i64} {
  func.func @timenet_kernel(%arg0: i32, %arg1: memref<8x1xf32, #tpu.memory_space<vmem>>, %arg2: memref<1x128xf32, #tpu.memory_space<vmem>>, %arg3: memref<1x128xf32, #tpu.memory_space<vmem>>, %arg4: memref<128x128xf32, #tpu.memory_space<vmem>>, %arg5: memref<1x128xf32, #tpu.memory_space<vmem>>, %arg6: memref<8x128xf32, #tpu.memory_space<vmem>>) attributes {dimension_semantics = [#tpu.dimension_semantics<parallel>], iteration_bounds = array<i64: 1>, scalar_prefetch = 0 : i64, scratch_operands = 0 : i64, tpu.core_type = #tpu.core_type<tc>, window_params = [{transform_indices = @transform_0, window_bounds = array<i64: 8, 1>}, {pipeline_mode = #tpu.pipeline_mode<synchronous>, transform_indices = @transform_1, window_bounds = array<i64: 1, 128>}, {pipeline_mode = #tpu.pipeline_mode<synchronous>, transform_indices = @transform_2, window_bounds = array<i64: 1, 128>}, {pipeline_mode = #tpu.pipeline_mode<synchronous>, transform_indices = @transform_3, window_bounds = array<i64: 128, 128>}, {pipeline_mode = #tpu.pipeline_mode<synchronous>, transform_indices = @transform_4, window_bounds = array<i64: 1, 128>}, {transform_indices = @transform_5, window_bounds = array<i64: 8, 128>}]} {
    %c0 = arith.constant 0 : index
    %c0_0 = arith.constant 0 : index
    %0 = vector.load %arg1[%c0, %c0_0] : memref<8x1xf32, #tpu.memory_space<vmem>>, vector<8x1xf32>
    %c0_1 = arith.constant 0 : index
    %c0_2 = arith.constant 0 : index
    %1 = vector.load %arg2[%c0_1, %c0_2] : memref<1x128xf32, #tpu.memory_space<vmem>>, vector<1x128xf32>
    %2 = vector.broadcast %0 : vector<8x1xf32> to vector<8x128xf32>
    %3 = vector.broadcast %1 : vector<1x128xf32> to vector<8x128xf32>
    %4 = arith.mulf %2, %3 : vector<8x128xf32>
    %c0_3 = arith.constant 0 : index
    %c0_4 = arith.constant 0 : index
    %5 = vector.load %arg3[%c0_3, %c0_4] : memref<1x128xf32, #tpu.memory_space<vmem>>, vector<1x128xf32>
    %6 = vector.broadcast %5 : vector<1x128xf32> to vector<8x128xf32>
    %7 = arith.addf %4, %6 : vector<8x128xf32>
    %cst = arith.constant 5.000000e-01 : f32
    %8 = vector.broadcast %cst : f32 to vector<8x128xf32>
    %9 = arith.mulf %8, %7 : vector<8x128xf32>
    %cst_5 = arith.constant 0.707106769 : f32
    %10 = vector.broadcast %cst_5 : f32 to vector<8x128xf32>
    %11 = arith.mulf %7, %10 : vector<8x128xf32>
    %12 = math.erf %11 : vector<8x128xf32>
    %cst_6 = arith.constant 1.000000e+00 : f32
    %13 = vector.broadcast %cst_6 : f32 to vector<8x128xf32>
    %14 = arith.addf %13, %12 : vector<8x128xf32>
    %15 = arith.mulf %9, %14 : vector<8x128xf32>
    %c0_7 = arith.constant 0 : index
    %c0_8 = arith.constant 0 : index
    %16 = vector.load %arg4[%c0_7, %c0_8] : memref<128x128xf32, #tpu.memory_space<vmem>>, vector<128x128xf32>
    %cst_9 = arith.constant dense<0.000000e+00> : vector<8x128xf32>
    %17 = tpu.matmul %15, %16, %cst_9 {dimension_numbers = #tpu.dot_dimension_numbers<[1], [0], [0], [1], [0, 0, 1, 1], [], []>} : vector<8x128xf32>, vector<128x128xf32>, vector<8x128xf32> -> vector<8x128xf32>
    %c0_10 = arith.constant 0 : index
    %c0_11 = arith.constant 0 : index
    %18 = vector.load %arg5[%c0_10, %c0_11] : memref<1x128xf32, #tpu.memory_space<vmem>>, vector<1x128xf32>
    %19 = vector.broadcast %18 : vector<1x128xf32> to vector<8x128xf32>
    %20 = arith.addf %17, %19 : vector<8x128xf32>
    %c0_12 = arith.constant 0 : index
    %c0_13 = arith.constant 0 : index
    %21 = vector.load %arg6[%c0_12, %c0_13] : memref<8x128xf32, #tpu.memory_space<vmem>>, vector<8x128xf32>
    tpu.vector_store %arg6[%c0_12, %c0_13], %20 {strides = array<i32>} : memref<8x128xf32, #tpu.memory_space<vmem>>, vector<8x128xf32>,
    return
  }
  func.func @transform_0(%arg0: i32) -> (i32, i32) {
    %c0_i32 = arith.constant 0 : i32
    %c0_i32_0 = arith.constant 0 : i32
    return %arg0, %c0_i32 : i32, i32
  }
  func.func @transform_1(%arg0: i32) -> (i32, i32) {
    %c0_i32 = arith.constant 0 : i32
    %c0_i32_0 = arith.constant 0 : i32
    %c0_i32_1 = arith.constant 0 : i32
    return %c0_i32, %c0_i32_0 : i32, i32
  }
  func.func @transform_2(%arg0: i32) -> (i32, i32) {
    %c0_i32 = arith.constant 0 : i32
    %c0_i32_0 = arith.constant 0 : i32
    %c0_i32_1 = arith.constant 0 : i32
    return %c0_i32, %c0_i32_0 : i32, i32
  }
  func.func @transform_3(%arg0: i32) -> (i32, i32) {
    %c0_i32 = arith.constant 0 : i32
    %c0_i32_0 = arith.constant 0 : i32
    %c0_i32_1 = arith.constant 0 : i32
    return %c0_i32, %c0_i32_0 : i32, i32
  }
  func.func @transform_4(%arg0: i32) -> (i32, i32) {
    %c0_i32 = arith.constant 0 : i32
    %c0_i32_0 = arith.constant 0 : i32
    %c0_i32_1 = arith.constant 0 : i32
    return %c0_i32, %c0_i32_0 : i32, i32
  }
  func.func @transform_5(%arg0: i32) -> (i32, i32) {
    %c0_i32 = arith.constant 0 : i32
    %c0_i32_0 = arith.constant 0 : i32
    return %arg0, %c0_i32 : i32, i32
  }
}

</mosaic_0001>

<llo_original>
// kernel: tpu_custom_call.1
$region0: #{tpu_custom_call.1}
  #allocation0 [shape = 'u32[]', space=smem, size = 0x4, offset = 0x4, fixed_abs, tag = 'smem constant byte address 0x4 - core index']
  #allocation1 [shape = 'u32[144,128]{1,0:T(1,128)}', space=vmem, size = 0x12000, scoped, tag = 'internal scratch']
  %s0 = inlined_call_operand.vmem [shape: f32[8,1], index: 0, kind: input, shape index: {}]
  %s1 = inlined_call_operand.vmem [shape: f32[1,128], index: 1, kind: input, shape index: {}]
  %s2 = inlined_call_operand.vmem [shape: f32[1,128], index: 2, kind: input, shape index: {}]
  %s3 = inlined_call_operand.hbm [shape: f32[128,128], index: 3, kind: input, shape index: {}]
  %s4 = inlined_call_operand.vmem [shape: f32[1,128], index: 4, kind: input, shape index: {}]
  %s5 = inlined_call_operand.hbm [shape: f32[8,128], index: 5, kind: output, shape index: {}]
  %s6 = sld [smem:[#allocation0]]
  $region34: #{tpu_custom_call.1} parent=0
    _
  %s8 = ssub.s32 1, %s6
  %s9 = scalar_select 0, %s8, %s6
  $region1: #{tpu_custom_call.1} parent=0
    #allocation2 [shape = 'u8[65536]{0}', space=vmem, size = 0x10000, scoped, tag = 'input window, operand 3, single buffered']
    #allocation3 [shape = 's32[1]{0}', space=sflag, size = 0x4, scoped, tag = 'scoped memory for tpu_custom_call.1']
    #allocation4 [shape = 's32[1]{0}', space=sflag, size = 0x4, scoped, tag = 'scoped memory for tpu_custom_call.1']
    #allocation5 [shape = 'u8[4096]{0}', space=vmem, size = 0x1000, scoped, tag = 'output window, operand 0, single buffered']
    %10 = vsyncpa [#allocation3], 0
    %11 = vsyncpa [#allocation4], 0
    // Predicated region
    $region2: #{tpu_custom_call.1} parent=1 // pred_check
      _
    $region3: #{tpu_custom_call.1} parent=1 // pred_check_branch
      %13 = sbr.rel (0) target = $region5
    $region4: #{tpu_custom_call.1} parent=1 // pred_region
      _
    $region5: #{tpu_custom_call.1} parent=1 // pred_fallthru
      _
    // Predicated region
    $region6: #{tpu_custom_call.1} parent=1 // pred_check
      _
    $region7: #{tpu_custom_call.1} parent=1 // pred_check_branch
      %15 = sbr.rel (0) target = $region9
    $region8: #{tpu_custom_call.1} parent=1 // pred_region
      _
    $region9: #{tpu_custom_call.1} parent=1 // pred_fallthru
      _
    // Predicated region
    $region10: #{tpu_custom_call.1} parent=1 // pred_check
      _
    $region11: #{tpu_custom_call.1} parent=1 // pred_check_branch
      %17 = sbr.rel (0) target = $region13
    $region12: #{tpu_custom_call.1} parent=1 // pred_region
      _
    $region13: #{tpu_custom_call.1} parent=1 // pred_fallthru
      _
    // Predicated region
    $region14: #{tpu_custom_call.1} parent=1 // pred_check
      _
    $region15: #{tpu_custom_call.1} parent=1 // pred_check_branch
      %19 = sbr.rel (0) target = $region17
    $region16: #{tpu_custom_call.1} parent=1 // pred_region
      %s21 = ssub.s32 2048, 2048
      %22 = vsyncadd [#allocation3], %s21
      %s23 = sshll.u32 [#allocation2], 4
      %s24 = int_to_ptr.vmem [resolvable:$true] %s23
      %29 = dma.hbm_to_vmem [thread:$0]  %s3, 2048, %s24, [#allocation3], 128, 128, 8
    $region17: #{tpu_custom_call.1} parent=1 // pred_fallthru
      _
    // Predicated region
    $region18: #{tpu_custom_call.1} parent=1 // pred_check
      _
    $region19: #{tpu_custom_call.1} parent=1 // pred_check_branch
      %31 = sbr.rel (0) target = $region21
    $region20: #{tpu_custom_call.1} parent=1 // pred_region
      _
    $region21: #{tpu_custom_call.1} parent=1 // pred_fallthru
      _
    // Predicated region
    $region22: #{tpu_custom_call.1} parent=1 // pred_check
      _
    $region23: #{tpu_custom_call.1} parent=1 // pred_check_branch
      %33 = sbr.rel (0) target = $region25
    $region24: #{tpu_custom_call.1} parent=1 // pred_region
      %34 = dma.done [#allocation3], 2048
    $region25: #{tpu_custom_call.1} parent=1 // pred_fallthru
      _
    %v35 = vld [vmem:[%s0] sm:$0xff]
    %v36 = vld [vmem:[%s1] sm:$0x1]
    %38 = vset.pattern.permute.xlu0 0
    %39 = vperm.xlu0 %38, %v35
    %v40 = vpop.permute.xlu0 %39
    %v43 = vlaneseq
    %v44 = vshrl.u32 %v43, 7
    %v45 = vsub.s32 0, %v44
    %v46 = vrot.slane %v36, %v45
    %v48 = vmul.f32 %v40, %v46
    %v49 = vld [vmem:[%s2] sm:$0x1]
    %v51 = vlaneseq
    %v52 = vshrl.u32 %v51, 7
    %v53 = vsub.s32 0, %v52
    %v54 = vrot.slane %v49, %v53
    %v56 = vadd.f32 %v48, %v54
    %v57 = vmul.f32 %v56, 0.5
    %v58 = vmul.f32 %v56, 0.70710677
    %v59 = verf.f32.pop %v58
    %v60 = vadd.f32 %v59, 1.0
    %v61 = vmul.f32 %v57, %v60
    %v62 = vld [vmem:[#allocation2] sm:$0xff]
    %v63 = vld [vmem:[#allocation2 + $0x8] sm:$0xff]
    %v64 = vld [vmem:[#allocation2 + $0x10] sm:$0xff]
    %v65 = vld [vmem:[#allocation2 + $0x18] sm:$0xff]
    %v66 = vld [vmem:[#allocation2 + $0x20] sm:$0xff]
    %v67 = vld [vmem:[#allocation2 + $0x28] sm:$0xff]
    %v68 = vld [vmem:[#allocation2 + $0x30] sm:$0xff]
    %v69 = vld [vmem:[#allocation2 + $0x38] sm:$0xff]
    %v70 = vld [vmem:[#allocation2 + $0x40] sm:$0xff]
    %v71 = vld [vmem:[#allocation2 + $0x48] sm:$0xff]
    %v72 = vld [vmem:[#allocation2 + $0x50] sm:$0xff]
    %v73 = vld [vmem:[#allocation2 + $0x58] sm:$0xff]
    %v74 = vld [vmem:[#allocation2 + $0x60] sm:$0xff]
    %v75 = vld [vmem:[#allocation2 + $0x68] sm:$0xff]
    %v76 = vld [vmem:[#allocation2 + $0x70] sm:$0xff]
    %v77 = vld [vmem:[#allocation2 + $0x78] sm:$0xff]
    %v78 = vld [vmem:[%s4] sm:$0x1]
    %v80 = vlaneseq
    %v81 = vshrl.u32 %v80, 7
    %v82 = vsub.s32 0, %v81
    %v83 = vrot.slane %v78, %v82
    %85 = vmatprep.subr.mxu0 0.0
    %86 = vmatpush1.msra.mxu0 %v62
    %87 = vmatprep.subr.mxu0 0.0
    %88 = vmatpush1.msra.mxu0 %v63
    %89 = vmatprep.subr.mxu0 0.0
    %90 = vmatpush1.msra.mxu0 %v64
    %91 = vmatprep.subr.mxu0 0.0
    %92 = vmatpush1.msra.mxu0 %v65
    %93 = vmatprep.subr.mxu0 0.0
    %94 = vmatpush1.msra.mxu0 %v66
    %95 = vmatprep.subr.mxu0 0.0
    %96 = vmatpush1.msra.mxu0 %v67
    %97 = vmatprep.subr.mxu0 0.0
    %98 = vmatpush1.msra.mxu0 %v68
    %99 = vmatprep.subr.mxu0 0.0
    %100 = vmatpush1.msra.mxu0 %v69
    %101 = vmatprep.subr.mxu0 0.0
    %102 = vmatpush1.msra.mxu0 %v70
    %103 = vmatprep.subr.mxu0 0.0
    %104 = vmatpush1.msra.mxu0 %v71
    %105 = vmatprep.subr.mxu0 0.0
    %106 = vmatpush1.msra.mxu0 %v72
    %107 = vmatprep.subr.mxu0 0.0
    %108 = vmatpush1.msra.mxu0 %v73
    %109 = vmatprep.subr.mxu0 0.0
    %110 = vmatpush1.msra.mxu0 %v74
    %111 = vmatprep.subr.mxu0 0.0
    %112 = vmatpush1.msra.mxu0 %v75
    %113 = vmatprep.subr.mxu0 0.0
    %114 = vmatpush1.msra.mxu0 %v76
    %115 = vmatprep.subr.mxu0 0.0
    %116 = vmatpush1.msra.mxu0 %v77
    %117 = vmatprep.subr.mxu0 0.0
    %118 = vmatpush1.msra.mxu0 0.0
    %119 = vmatprep.subr.mxu0 0.0
    %120 = vmatpush1.msra.mxu0 0.0
    %121 = vmatprep.subr.mxu0 0.0
    %122 = vmatpush1.msra.mxu0 0.0
    %123 = vmatprep.subr.mxu0 0.0
    %124 = vmatpush1.msra.mxu0 0.0
    %125 = vmatprep.subr.mxu0 0.0
    %126 = vmatpush1.msra.mxu0 0.0
    %127 = vmatprep.subr.mxu0 0.0
    %128 = vmatpush1.msra.mxu0 0.0
    %129 = vmatprep.subr.mxu0 0.0
    %130 = vmatpush1.msra.mxu0 0.0
    %131 = vmatprep.subr.mxu0 0.0
    %132 = vmatpush1.msra.mxu0 0.0
    %133 = vmatprep.subr.mxu0 0.0
    %134 = vmatpush1.msra.mxu0 0.0
    %135 = vmatprep.subr.mxu0 0.0
    %136 = vmatpush1.msra.mxu0 0.0
    %137 = vmatprep.subr.mxu0 0.0
    %138 = vmatpush1.msra.mxu0 0.0
    %139 = vmatprep.subr.mxu0 0.0
    %140 = vmatpush1.msra.mxu0 0.0
    %141 = vmatprep.subr.mxu0 0.0
    %142 = vmatpush1.msra.mxu0 0.0
    %143 = vmatprep.subr.mxu0 0.0
    %144 = vmatpush1.msra.mxu0 0.0
    %145 = vmatprep.subr.mxu0 0.0
    %146 = vmatpush1.msra.mxu0 0.0
    %147 = vmatprep.subr.mxu0 0.0
    %148 = vmatpush1.msra.mxu0 0.0
    %149 = vmatprep.mubr.f32.mxu0 0.0
    %150 = vmatmul.mubr.f32.gmra.mrb[0].mxu0 %v61
    %v151 = vpop.f32.mrb[0].mxu0
    %v152 = vadd.f32 %v83, %v151
    %v153 = vpop.f32.mrb[0].mxu0
    %154 = vdwg.mxu0
    %155 = vst [vmem:[#allocation5] sm:$0xff] %v152
    // Predicated region
    $region26: #{tpu_custom_call.1} parent=1 // pred_check
      _
    $region27: #{tpu_custom_call.1} parent=1 // pred_check_branch
      %157 = sbr.rel (0) target = $region29
    $region28: #{tpu_custom_call.1} parent=1 // pred_region
      %s159 = ssub.s32 128, 128
      %160 = vsyncadd [#allocation4], %s159
      %s162 = sshll.u32 [#allocation5], 4
      %s163 = int_to_ptr.vmem [resolvable:$true] %s162
      %165 = dma.vmem_to_hbm [thread:$0]  %s163, 128, %s5, [#allocation4]
    $region29: #{tpu_custom_call.1} parent=1 // pred_fallthru
      _
    // Predicated region
    $region30: #{tpu_custom_call.1} parent=1 // pred_check
      _
    $region31: #{tpu_custom_call.1} parent=1 // pred_check_branch
      %167 = sbr.rel (0) target = $region33
    $region32: #{tpu_custom_call.1} parent=1 // pred_region
      %168 = dma.done [#allocation4], 128
    $region33: #{tpu_custom_call.1} parent=1 // pred_fallthru
      _
    %169 = vsyncpa [#allocation3], 1
    %170 = vsyncpa [#allocation4], 1

</llo_original>
